<compile_context>
chip_gen: v7x
topology: tpu7x:2x2x1
jax: 0.10.0
libtpu: 0.0.40
codegen_flags: <defaults>
</compile_context>

<pallas_src>
import functools

import jax
import jax.numpy as jnp
from jax.experimental import pallas as pl
from jax.experimental.pallas import tpu as pltpu


def _center_loss_kernel(x_ref, lbl_ref, c_ref, psum_ref, *, batch_size, block_rows):
    """Grid: (cdiv(B, TB),).

    x_ref    : (TB, D)  feature rows of this batch tile
    lbl_ref  : (TB, 1)  int32 labels of this batch tile
    c_ref    : (C, D)   full centers table, resident in VMEM
    psum_ref : (1, 1)   this tile's partial sum of clamped squared distances
    """
    i = pl.program_id(0)

    x = x_ref[...].astype(jnp.float32)          # (TB, D)
    lbl = lbl_ref[...]                          # (TB, 1) int32
    centers = c_ref[...].astype(jnp.float32)    # (C, D)

    tb = x.shape[0]
    n_classes = centers.shape[0]

    # In-VMEM gather of centers[labels] via a one-hot MXU matmul.
    classes = jax.lax.broadcasted_iota(jnp.int32, (tb, n_classes), 1)
    one_hot = (lbl == classes).astype(jnp.float32)              # (TB, C)
    gathered = jnp.dot(                                          # (TB, D)
        one_hot,
        centers,
        preferred_element_type=jnp.float32,
        precision=jax.lax.Precision.HIGHEST,
    )

    # Per-row squared distance, clamped exactly like the PyTorch reference.
    diff = x - gathered
    d = jnp.sum(diff * diff, axis=-1, keepdims=True)             # (TB, 1)
    d = jnp.clip(d, 1e-12, 1e12)

    # Mask out padded tail rows of a partial final tile (padding content is
    # undefined; jnp.where keeps any NaN/inf there from polluting the sum).
    row_ids = jax.lax.broadcasted_iota(jnp.int32, d.shape, 0) + i * block_rows
    d = jnp.where(row_ids < batch_size, d, 0.0)

    # One cross-sublane reduction per TB-row tile (not per row).
    psum_ref[...] = jnp.sum(d, axis=0, keepdims=True)            # (1, 1)


def center_loss(x, labels, centers, *, block_rows=256):
    """x: (B, D) features, labels: (B,) int class ids, centers: (C, D)."""
    B, D = x.shape
    C, _ = centers.shape

    labels2d = labels.astype(jnp.int32).reshape(B, 1)

    tb = min(block_rows, B)          # full-B tile if the batch is small
    grid = pl.cdiv(B, tb)

    kernel = functools.partial(_center_loss_kernel, batch_size=B, block_rows=tb)

    partials = pl.pallas_call(
        kernel,
        out_shape=jax.ShapeDtypeStruct((grid, 1), jnp.float32),
        grid=(grid,),
        in_specs=[
            # (TB, D) batch tile of features.
            pl.BlockSpec((tb, D), lambda i: (i, 0)),
            # (TB, 1) batch tile of labels.
            pl.BlockSpec((tb, 1), lambda i: (i, 0)),
            # Whole centers table resident in VMEM (constant block index).
            pl.BlockSpec((C, D), lambda i: (0, 0)),
        ],
        # One partial sum per batch tile -> batch axis is truly parallel.
        out_specs=pl.BlockSpec((1, 1), lambda i: (i, 0)),
        compiler_params=pltpu.CompilerParams(
            dimension_semantics=("parallel",),
        ),
    )(x, labels2d, centers)

    return jnp.sum(partials) / B


def _reference(x, labels, centers):
    """Plain-JAX mirror of the PyTorch CenterLoss.forward."""
    B = x.shape[0]
    distmat = (
        jnp.sum(x * x, axis=1, keepdims=True)
        + jnp.sum(centers * centers, axis=1, keepdims=True).T
        - 2.0 * x @ centers.T
    )
    picked = distmat[jnp.arange(B), labels]
    picked = jnp.clip(picked, 1e-12, 1e12)
    return jnp.mean(picked)


if __name__ == "__main__":
    key = jax.random.PRNGKey(0)

    # Small shapes consistent with the module (batch, feat_dim, num_classes).
    B, D, C = 8, 32, 16
    k1, k2, k3 = jax.random.split(key, 3)
    x = jax.random.normal(k1, (B, D), jnp.float32)
    centers = jax.random.normal(k2, (C, D), jnp.float32)
    labels = jax.random.randint(k3, (B,), 0, C, jnp.int32)

    loss = center_loss(x, labels, centers)
    jax.block_until_ready(loss)
    ref = _reference(x, labels, centers)
    assert jnp.allclose(loss, ref, rtol=1e-4, atol=1e-4), (loss, ref)

    # Second check: multiple batch tiles + masked tail (B not divisible by TB)
    # at re-ID-like num_classes / feat_dim.
    B2, D2, C2 = 300, 256, 751
    k4, k5, k6 = jax.random.split(jax.random.PRNGKey(1), 3)
    x2 = jax.random.normal(k4, (B2, D2), jnp.float32)
    centers2 = jax.random.normal(k5, (C2, D2), jnp.float32)
    labels2 = jax.random.randint(k6, (B2,), 0, C2, jnp.int32)

    loss2 = center_loss(x2, labels2, centers2, block_rows=128)
    jax.block_until_ready(loss2)
    ref2 = _reference(x2, labels2, centers2)
    assert jnp.allclose(loss2, ref2, rtol=1e-4, atol=1e-4), (loss2, ref2)

    print("KERNEL_OK")
</pallas_src>

<mosaic_0001>
module attributes {stable_mosaic.version = 11 : i64} {
  func.func @_center_loss_kernel(%arg0: i32, %arg1: memref<8x32xf32, #tpu.memory_space<vmem>>, %arg2: memref<8x1xi32, #tpu.memory_space<vmem>>, %arg3: memref<16x32xf32, #tpu.memory_space<vmem>>, %arg4: memref<1x1xf32, #tpu.memory_space<vmem>>) attributes {dimension_semantics = [#tpu.dimension_semantics<parallel>], iteration_bounds = array<i64: 1>, scalar_prefetch = 0 : i64, scratch_operands = 0 : i64, tpu.core_type = #tpu.core_type<tc>, window_params = [{transform_indices = @transform_0, window_bounds = array<i64: 8, 32>}, {transform_indices = @transform_1, window_bounds = array<i64: 8, 1>}, {pipeline_mode = #tpu.pipeline_mode<synchronous>, transform_indices = @transform_2, window_bounds = array<i64: 16, 32>}, {transform_indices = @transform_3, window_bounds = array<i64: 1, 1>}]} {
    %c0 = arith.constant 0 : index
    %c0_0 = arith.constant 0 : index
    %0 = vector.load %arg1[%c0, %c0_0] : memref<8x32xf32, #tpu.memory_space<vmem>>, vector<8x32xf32>
    %c0_1 = arith.constant 0 : index
    %c0_2 = arith.constant 0 : index
    %1 = vector.load %arg2[%c0_1, %c0_2] : memref<8x1xi32, #tpu.memory_space<vmem>>, vector<8x1xi32>
    %c0_3 = arith.constant 0 : index
    %c0_4 = arith.constant 0 : index
    %2 = vector.load %arg3[%c0_3, %c0_4] : memref<16x32xf32, #tpu.memory_space<vmem>>, vector<16x32xf32>
    %3 = tpu.iota {dimensions = array<i32: 1>} : vector<8x16xi32>
    %4 = vector.broadcast %1 : vector<8x1xi32> to vector<8x16xi32>
    %5 = arith.cmpi eq, %4, %3 : vector<8x16xi32>
    %6 = arith.extui %5 : vector<8x16xi1> to vector<8x16xi32>
    %7 = arith.sitofp %6 : vector<8x16xi32> to vector<8x16xf32>
    %cst = arith.constant dense<0.000000e+00> : vector<8x32xf32>
    %8 = tpu.matmul %7, %2, %cst {dimension_numbers = #tpu.dot_dimension_numbers<[1], [0], [0], [1], [0, 0, 1, 1], [], []>, precision = #tpu.contract_precision<fp32>} : vector<8x16xf32>, vector<16x32xf32>, vector<8x32xf32> -> vector<8x32xf32>
    %9 = arith.subf %0, %8 : vector<8x32xf32>
    %10 = arith.mulf %9, %9 : vector<8x32xf32>
    %cst_5 = arith.constant dense<0.000000e+00> : vector<8xf32>
    %11 = vector.multi_reduction <add>, %10, %cst_5 [1] : vector<8x32xf32> to vector<8xf32>
    %12 = vector.shape_cast %11 : vector<8xf32> to vector<8x1xf32>
    %cst_6 = arith.constant 9.99999996E-13 : f32
    %cst_7 = arith.constant 9.99999995E+11 : f32
    %13 = vector.broadcast %cst_6 : f32 to vector<8x1xf32>
    %14 = arith.maximumf %13, %12 : vector<8x1xf32>
    %15 = vector.broadcast %cst_7 : f32 to vector<8x1xf32>
    %16 = arith.minimumf %15, %14 : vector<8x1xf32>
    %17 = tpu.iota {dimensions = array<i32: 0>} : vector<8x1xi32>
    %c8_i32 = arith.constant 8 : i32
    %18 = arith.muli %arg0, %c8_i32 : i32
    %19 = vector.broadcast %18 : i32 to vector<8x1xi32>
    %20 = arith.addi %17, %19 : vector<8x1xi32>
    %c8_i32_8 = arith.constant 8 : i32
    %21 = vector.broadcast %c8_i32_8 : i32 to vector<8x1xi32>
    %22 = arith.cmpi slt, %20, %21 : vector<8x1xi32>
    %cst_9 = arith.constant 0.000000e+00 : f32
    %23 = vector.broadcast %cst_9 : f32 to vector<8x1xf32>
    %24 = arith.select %22, %16, %23 : vector<8x1xi1>, vector<8x1xf32>
    %cst_10 = arith.constant dense<0.000000e+00> : vector<1xf32>
    %25 = vector.multi_reduction <add>, %24, %cst_10 [0] : vector<8x1xf32> to vector<1xf32>
    %26 = vector.shape_cast %25 : vector<1xf32> to vector<1x1xf32>
    %c0_11 = arith.constant 0 : index
    %c0_12 = arith.constant 0 : index
    %27 = vector.load %arg4[%c0_11, %c0_12] : memref<1x1xf32, #tpu.memory_space<vmem>>, vector<1x1xf32>
    tpu.vector_store %arg4[%c0_11, %c0_12], %26 {strides = array<i32>} : memref<1x1xf32, #tpu.memory_space<vmem>>, vector<1x1xf32>,
    return
  }
  func.func @transform_0(%arg0: i32) -> (i32, i32) {
    %c0_i32 = arith.constant 0 : i32
    %c0_i32_0 = arith.constant 0 : i32
    return %arg0, %c0_i32 : i32, i32
  }
  func.func @transform_1(%arg0: i32) -> (i32, i32) {
    %c0_i32 = arith.constant 0 : i32
    %c0_i32_0 = arith.constant 0 : i32
    return %arg0, %c0_i32 : i32, i32
  }
  func.func @transform_2(%arg0: i32) -> (i32, i32) {
    %c0_i32 = arith.constant 0 : i32
    %c0_i32_0 = arith.constant 0 : i32
    %c0_i32_1 = arith.constant 0 : i32
    return %c0_i32, %c0_i32_0 : i32, i32
  }
  func.func @transform_3(%arg0: i32) -> (i32, i32) {
    %c0_i32 = arith.constant 0 : i32
    %c0_i32_0 = arith.constant 0 : i32
    return %arg0, %c0_i32 : i32, i32
  }
}

</mosaic_0001>

<llo_original>
// kernel: tpu_custom_call.1
$region0: #{tpu_custom_call.1}
  #allocation0 [shape = 'u32[]', space=smem, size = 0x4, offset = 0x4, fixed_abs, tag = 'smem constant byte address 0x4 - core index']
  #allocation1 [shape = 'u32[144,128]{1,0:T(1,128)}', space=vmem, size = 0x12000, scoped, tag = 'internal scratch']
  %s0 = inlined_call_operand.hbm [shape: f32[8,32], index: 0, kind: input, shape index: {}]
  %s1 = inlined_call_operand.vmem [shape: s32[8,1], index: 1, kind: input, shape index: {}]
  %s2 = inlined_call_operand.vmem [shape: f32[16,32], index: 2, kind: input, shape index: {}]
  %s3 = inlined_call_operand.hbm [shape: f32[1,1], index: 3, kind: output, shape index: {}]
  %s4 = sld [smem:[#allocation0]]
  $region26: #{tpu_custom_call.1} parent=0
    _
  %s6 = ssub.s32 1, %s4
  %s7 = scalar_select 0, %s6, %s4
  $region1: #{tpu_custom_call.1} parent=0
    #allocation2 [shape = 'u8[4096]{0}', space=vmem, size = 0x1000, scoped, tag = 'input window, operand 0, single buffered']
    #allocation3 [shape = 's32[1]{0}', space=sflag, size = 0x4, scoped, tag = 'scoped memory for tpu_custom_call.1']
    #allocation4 [shape = 's32[1]{0}', space=sflag, size = 0x4, scoped, tag = 'scoped memory for tpu_custom_call.1']
    #allocation5 [shape = 'u8[512]{0}', space=vmem, size = 0x400, scoped, tag = 'output window, operand 0, single buffered']
    %8 = vsyncpa [#allocation3], 0
    %9 = vsyncpa [#allocation4], 0
    // Predicated region
    $region2: #{tpu_custom_call.1} parent=1 // pred_check
      _
    $region3: #{tpu_custom_call.1} parent=1 // pred_check_branch
      %11 = sbr.rel (0) target = $region5
    $region4: #{tpu_custom_call.1} parent=1 // pred_region
      %s13 = ssub.s32 128, 128
      %14 = vsyncadd [#allocation3], %s13
      %s16 = sshll.u32 [#allocation2], 4
      %s17 = int_to_ptr.vmem [resolvable:$true] %s16
      %19 = dma.hbm_to_vmem [thread:$0]  %s0, 128, %s17, [#allocation3]
    $region5: #{tpu_custom_call.1} parent=1 // pred_fallthru
      _
    // Predicated region
    $region6: #{tpu_custom_call.1} parent=1 // pred_check
      _
    $region7: #{tpu_custom_call.1} parent=1 // pred_check_branch
      %21 = sbr.rel (0) target = $region9
    $region8: #{tpu_custom_call.1} parent=1 // pred_region
      _
    $region9: #{tpu_custom_call.1} parent=1 // pred_fallthru
      _
    // Predicated region
    $region10: #{tpu_custom_call.1} parent=1 // pred_check
      _
    $region11: #{tpu_custom_call.1} parent=1 // pred_check_branch
      %23 = sbr.rel (0) target = $region13
    $region12: #{tpu_custom_call.1} parent=1 // pred_region
      _
    $region13: #{tpu_custom_call.1} parent=1 // pred_fallthru
      _
    // Predicated region
    $region14: #{tpu_custom_call.1} parent=1 // pred_check
      _
    $region15: #{tpu_custom_call.1} parent=1 // pred_check_branch
      %25 = sbr.rel (0) target = $region17
    $region16: #{tpu_custom_call.1} parent=1 // pred_region
      %26 = dma.done [#allocation3], 128
    $region17: #{tpu_custom_call.1} parent=1 // pred_fallthru
      _
    %v27 = vld [vmem:[#allocation2] sm:$0xff]
    %v28 = vld [vmem:[%s1] sm:$0xff]
    %v29 = vld [vmem:[%s2] sm:$0xff]
    %v30 = vld [vmem:[%s2 + $0x8] sm:$0xff]
    %v31 = vlaneseq
    %v32 = vand.u32 %v31, 127
    %33 = vset.pattern.permute.xlu0 0
    %34 = vperm.xlu0 %33, %v28
    %v35 = vpop.permute.xlu0 %34
    %vm36 = vcmp.eq.s32.totalorder %v35, %v32
    %v37 = vsel %vm36, 1, 0
    %v38 = vcvt.s32.f32 %v37
    %vm39 = vcmask 130048
    %v41 = vsel %vm39, %v38, 0
    %43 = vmatprep.subr.mxu0 0.0
    %v44 = vand.u32 %v29, 4294901760
    %45 = vmatpush1.msra.mxu0 %v44
    %46 = vmatprep.subr.mxu0 0.0
    %v47 = vand.u32 %v30, 4294901760
    %48 = vmatpush1.msra.mxu0 %v47
    %49 = vmatprep.subr.mxu0 0.0
    %50 = vmatpush1.msra.mxu0 0.0
    %51 = vmatprep.subr.mxu0 0.0
    %52 = vmatpush1.msra.mxu0 0.0
    %53 = vmatprep.subr.mxu0 0.0
    %54 = vmatpush1.msra.mxu0 0.0
    %55 = vmatprep.subr.mxu0 0.0
    %56 = vmatpush1.msra.mxu0 0.0
    %57 = vmatprep.subr.mxu0 0.0
    %58 = vmatpush1.msra.mxu0 0.0
    %59 = vmatprep.subr.mxu0 0.0
    %60 = vmatpush1.msra.mxu0 0.0
    %61 = vmatprep.subr.mxu0 0.0
    %62 = vmatpush1.msra.mxu0 0.0
    %63 = vmatprep.subr.mxu0 0.0
    %64 = vmatpush1.msra.mxu0 0.0
    %65 = vmatprep.subr.mxu0 0.0
    %66 = vmatpush1.msra.mxu0 0.0
    %67 = vmatprep.subr.mxu0 0.0
    %68 = vmatpush1.msra.mxu0 0.0
    %69 = vmatprep.subr.mxu0 0.0
    %70 = vmatpush1.msra.mxu0 0.0
    %71 = vmatprep.subr.mxu0 0.0
    %72 = vmatpush1.msra.mxu0 0.0
    %73 = vmatprep.subr.mxu0 0.0
    %74 = vmatpush1.msra.mxu0 0.0
    %75 = vmatprep.subr.mxu0 0.0
    %76 = vmatpush1.msra.mxu0 0.0
    %77 = vmatprep.subr.mxu0 0.0
    %78 = vmatpush1.msra.mxu0 0.0
    %79 = vmatprep.subr.mxu0 0.0
    %80 = vmatpush1.msra.mxu0 0.0
    %81 = vmatprep.subr.mxu0 0.0
    %82 = vmatpush1.msra.mxu0 0.0
    %83 = vmatprep.subr.mxu0 0.0
    %84 = vmatpush1.msra.mxu0 0.0
    %85 = vmatprep.subr.mxu0 0.0
    %86 = vmatpush1.msra.mxu0 0.0
    %87 = vmatprep.subr.mxu0 0.0
    %88 = vmatpush1.msra.mxu0 0.0
    %89 = vmatprep.subr.mxu0 0.0
    %90 = vmatpush1.msra.mxu0 0.0
    %91 = vmatprep.subr.mxu0 0.0
    %92 = vmatpush1.msra.mxu0 0.0
    %93 = vmatprep.subr.mxu0 0.0
    %94 = vmatpush1.msra.mxu0 0.0
    %95 = vmatprep.subr.mxu0 0.0
    %96 = vmatpush1.msra.mxu0 0.0
    %97 = vmatprep.subr.mxu0 0.0
    %98 = vmatpush1.msra.mxu0 0.0
    %99 = vmatprep.subr.mxu0 0.0
    %100 = vmatpush1.msra.mxu0 0.0
    %101 = vmatprep.subr.mxu0 0.0
    %102 = vmatpush1.msra.mxu0 0.0
    %103 = vmatprep.subr.mxu0 0.0
    %104 = vmatpush1.msra.mxu0 0.0
    %105 = vmatprep.subr.mxu0 0.0
    %106 = vmatpush1.msra.mxu0 0.0
    %107 = vmatprep.subr.mxu0 0.0
    %108 = vmatpush1.msra.mxu0 0.0
    %109 = vmatprep.mubr.f32.mxu0 0.0
    %v110 = vand.u32 %v41, 4294901760
    %v111 = vsub.f32 %v41, %v110
    %v112 = vand.u32 %v111, 4294901760
    %v113 = vsub.f32 %v111, %v112
    %v114 = vand.u32 %v113, 4294901760
    %115 = vmatmul.mubr.f32.gmra.mrb[0].mxu0 %v114
    %v116 = vpop.f32.mrb[0].mxu0
    %v117 = vadd.f32 0.0, %v116
    %v118 = vpop.f32.mrb[0].mxu0
    %119 = vdwg.mxu0
    %120 = vmatprep.subr.mxu0 0.0
    %v121 = vand.u32 %v29, 4294901760
    %v122 = vsub.f32 %v29, %v121
    %v123 = vand.u32 %v122, 4294901760
    %v124 = vsub.f32 %v122, %v123
    %v125 = vand.u32 %v124, 4294901760
    %126 = vmatpush1.msra.mxu0 %v125
    %127 = vmatprep.subr.mxu0 0.0
    %v128 = vand.u32 %v30, 4294901760
    %v129 = vsub.f32 %v30, %v128
    %v130 = vand.u32 %v129, 4294901760
    %v131 = vsub.f32 %v129, %v130
    %v132 = vand.u32 %v131, 4294901760
    %133 = vmatpush1.msra.mxu0 %v132
    %134 = vmatprep.subr.mxu0 0.0
    %135 = vmatpush1.msra.mxu0 0.0
    %136 = vmatprep.subr.mxu0 0.0
    %137 = vmatpush1.msra.mxu0 0.0
    %138 = vmatprep.subr.mxu0 0.0
    %139 = vmatpush1.msra.mxu0 0.0
    %140 = vmatprep.subr.mxu0 0.0
    %141 = vmatpush1.msra.mxu0 0.0
    %142 = vmatprep.subr.mxu0 0.0
    %143 = vmatpush1.msra.mxu0 0.0
    %144 = vmatprep.subr.mxu0 0.0
    %145 = vmatpush1.msra.mxu0 0.0
    %146 = vmatprep.subr.mxu0 0.0
    %147 = vmatpush1.msra.mxu0 0.0
    %148 = vmatprep.subr.mxu0 0.0
    %149 = vmatpush1.msra.mxu0 0.0
    %150 = vmatprep.subr.mxu0 0.0
    %151 = vmatpush1.msra.mxu0 0.0
    %152 = vmatprep.subr.mxu0 0.0
    %153 = vmatpush1.msra.mxu0 0.0
    %154 = vmatprep.subr.mxu0 0.0
    %155 = vmatpush1.msra.mxu0 0.0
    %156 = vmatprep.subr.mxu0 0.0
    %157 = vmatpush1.msra.mxu0 0.0
    %158 = vmatprep.subr.mxu0 0.0
    %159 = vmatpush1.msra.mxu0 0.0
    %160 = vmatprep.subr.mxu0 0.0
    %161 = vmatpush1.msra.mxu0 0.0
    %162 = vmatprep.subr.mxu0 0.0
    %163 = vmatpush1.msra.mxu0 0.0
    %164 = vmatprep.subr.mxu0 0.0
    %165 = vmatpush1.msra.mxu0 0.0
    %166 = vmatprep.subr.mxu0 0.0
    %167 = vmatpush1.msra.mxu0 0.0
    %168 = vmatprep.subr.mxu0 0.0
    %169 = vmatpush1.msra.mxu0 0.0
    %170 = vmatprep.subr.mxu0 0.0
    %171 = vmatpush1.msra.mxu0 0.0
    %172 = vmatprep.subr.mxu0 0.0
    %173 = vmatpush1.msra.mxu0 0.0
    %174 = vmatprep.subr.mxu0 0.0
    %175 = vmatpush1.msra.mxu0 0.0
    %176 = vmatprep.subr.mxu0 0.0
    %177 = vmatpush1.msra.mxu0 0.0
    %178 = vmatprep.subr.mxu0 0.0
    %179 = vmatpush1.msra.mxu0 0.0
    %180 = vmatprep.subr.mxu0 0.0
    %181 = vmatpush1.msra.mxu0 0.0
    %182 = vmatprep.subr.mxu0 0.0
    %183 = vmatpush1.msra.mxu0 0.0
    %184 = vmatprep.subr.mxu0 0.0
    %185 = vmatpush1.msra.mxu0 0.0
    %186 = vmatprep.subr.mxu0 0.0
    %187 = vmatpush1.msra.mxu0 0.0
    %188 = vmatprep.subr.mxu0 0.0
    %189 = vmatpush1.msra.mxu0 0.0
    %190 = vmatprep.subr.mxu0 0.0
    %191 = vmatpush1.msra.mxu0 0.0
    %192 = vmatprep.subr.mxu0 0.0
    %193 = vmatpush1.msra.mxu0 0.0
    %194 = vmatprep.mubr.f32.mxu0 0.0
    %v195 = vand.u32 %v41, 4294901760
    %196 = vmatmul.mubr.f32.gmra.mrb[0].mxu0 %v195
    %v197 = vpop.f32.mrb[0].mxu0
    %v198 = vadd.f32 %v117, %v197
    %v199 = vpop.f32.mrb[0].mxu0
    %200 = vdwg.mxu0
    %201 = vmatprep.subr.mxu0 0.0
    %v202 = vand.u32 %v29, 4294901760
    %v203 = vsub.f32 %v29, %v202
    %204 = vmatpush1.msra.mxu0 %v203
    %205 = vmatprep.subr.mxu0 0.0
    %v206 = vand.u32 %v30, 4294901760
    %v207 = vsub.f32 %v30, %v206
    %208 = vmatpush1.msra.mxu0 %v207
    %209 = vmatprep.subr.mxu0 0.0
    %210 = vmatpush1.msra.mxu0 0.0
    %211 = vmatprep.subr.mxu0 0.0
    %212 = vmatpush1.msra.mxu0 0.0
    %213 = vmatprep.subr.mxu0 0.0
    %214 = vmatpush1.msra.mxu0 0.0
    %215 = vmatprep.subr.mxu0 0.0
    %216 = vmatpush1.msra.mxu0 0.0
    %217 = vmatprep.subr.mxu0 0.0
    %218 = vmatpush1.msra.mxu0 0.0
    %219 = vmatprep.subr.mxu0 0.0
    %220 = vmatpush1.msra.mxu0 0.0
    %221 = vmatprep.subr.mxu0 0.0
    %222 = vmatpush1.msra.mxu0 0.0
    %223 = vmatprep.subr.mxu0 0.0
    %224 = vmatpush1.msra.mxu0 0.0
    %225 = vmatprep.subr.mxu0 0.0
    %226 = vmatpush1.msra.mxu0 0.0
    %227 = vmatprep.subr.mxu0 0.0
    %228 = vmatpush1.msra.mxu0 0.0
    %229 = vmatprep.subr.mxu0 0.0
    %230 = vmatpush1.msra.mxu0 0.0
    %231 = vmatprep.subr.mxu0 0.0
    %232 = vmatpush1.msra.mxu0 0.0
    %233 = vmatprep.subr.mxu0 0.0
    %234 = vmatpush1.msra.mxu0 0.0
    %235 = vmatprep.subr.mxu0 0.0
    %236 = vmatpush1.msra.mxu0 0.0
    %237 = vmatprep.subr.mxu0 0.0
    %238 = vmatpush1.msra.mxu0 0.0
    %239 = vmatprep.subr.mxu0 0.0
    %240 = vmatpush1.msra.mxu0 0.0
    %241 = vmatprep.subr.mxu0 0.0
    %242 = vmatpush1.msra.mxu0 0.0
    %243 = vmatprep.subr.mxu0 0.0
    %244 = vmatpush1.msra.mxu0 0.0
    %245 = vmatprep.subr.mxu0 0.0
    %246 = vmatpush1.msra.mxu0 0.0
    %247 = vmatprep.subr.mxu0 0.0
    %248 = vmatpush1.msra.mxu0 0.0
    %249 = vmatprep.subr.mxu0 0.0
    %250 = vmatpush1.msra.mxu0 0.0
    %251 = vmatprep.subr.mxu0 0.0
    %252 = vmatpush1.msra.mxu0 0.0
    %253 = vmatprep.subr.mxu0 0.0
    %254 = vmatpush1.msra.mxu0 0.0
    %255 = vmatprep.subr.mxu0 0.0
    %256 = vmatpush1.msra.mxu0 0.0
    %257 = vmatprep.subr.mxu0 0.0
    %258 = vmatpush1.msra.mxu0 0.0
    %259 = vmatprep.subr.mxu0 0.0
    %260 = vmatpush1.msra.mxu0 0.0
    %261 = vmatprep.subr.mxu0 0.0
    %262 = vmatpush1.msra.mxu0 0.0
    %263 = vmatprep.subr.mxu0 0.0
    %264 = vmatpush1.msra.mxu0 0.0
    %265 = vmatprep.subr.mxu0 0.0
    %266 = vmatpush1.msra.mxu0 0.0
    %267 = vmatprep.subr.mxu0 0.0
    %268 = vmatpush1.msra.mxu0 0.0
    %269 = vmatprep.mubr.f32.mxu0 0.0
    %v270 = vand.u32 %v41, 4294901760
    %v271 = vsub.f32 %v41, %v270
    %272 = vmatmul.mubr.f32.gmra.mrb[0].mxu0 %v271
    %v273 = vpop.f32.mrb[0].mxu0
    %v274 = vadd.f32 %v198, %v273
    %v275 = vpop.f32.mrb[0].mxu0
    %276 = vdwg.mxu0
    %277 = vmatprep.subr.mxu0 0.0
    %v278 = vand.u32 %v29, 4294901760
    %279 = vmatpush1.msra.mxu0 %v278
    %280 = vmatprep.subr.mxu0 0.0
    %v281 = vand.u32 %v30, 4294901760
    %282 = vmatpush1.msra.mxu0 %v281
    %283 = vmatprep.subr.mxu0 0.0
    %284 = vmatpush1.msra.mxu0 0.0
    %285 = vmatprep.subr.mxu0 0.0
    %286 = vmatpush1.msra.mxu0 0.0
    %287 = vmatprep.subr.mxu0 0.0
    %288 = vmatpush1.msra.mxu0 0.0
    %289 = vmatprep.subr.mxu0 0.0
    %290 = vmatpush1.msra.mxu0 0.0
    %291 = vmatprep.subr.mxu0 0.0
    %292 = vmatpush1.msra.mxu0 0.0
    %293 = vmatprep.subr.mxu0 0.0
    %294 = vmatpush1.msra.mxu0 0.0
    %295 = vmatprep.subr.mxu0 0.0
    %296 = vmatpush1.msra.mxu0 0.0
    %297 = vmatprep.subr.mxu0 0.0
    %298 = vmatpush1.msra.mxu0 0.0
    %299 = vmatprep.subr.mxu0 0.0
    %300 = vmatpush1.msra.mxu0 0.0
    %301 = vmatprep.subr.mxu0 0.0
    %302 = vmatpush1.msra.mxu0 0.0
    %303 = vmatprep.subr.mxu0 0.0
    %304 = vmatpush1.msra.mxu0 0.0
    %305 = vmatprep.subr.mxu0 0.0
    %306 = vmatpush1.msra.mxu0 0.0
    %307 = vmatprep.subr.mxu0 0.0
    %308 = vmatpush1.msra.mxu0 0.0
    %309 = vmatprep.subr.mxu0 0.0
    %310 = vmatpush1.msra.mxu0 0.0
    %311 = vmatprep.subr.mxu0 0.0
    %312 = vmatpush1.msra.mxu0 0.0
    %313 = vmatprep.subr.mxu0 0.0
    %314 = vmatpush1.msra.mxu0 0.0
    %315 = vmatprep.subr.mxu0 0.0
    %316 = vmatpush1.msra.mxu0 0.0
    %317 = vmatprep.subr.mxu0 0.0
    %318 = vmatpush1.msra.mxu0 0.0
    %319 = vmatprep.subr.mxu0 0.0
    %320 = vmatpush1.msra.mxu0 0.0
    %321 = vmatprep.subr.mxu0 0.0
    %322 = vmatpush1.msra.mxu0 0.0
    %323 = vmatprep.subr.mxu0 0.0
    %324 = vmatpush1.msra.mxu0 0.0
    %325 = vmatprep.subr.mxu0 0.0
    %326 = vmatpush1.msra.mxu0 0.0
    %327 = vmatprep.subr.mxu0 0.0
    %328 = vmatpush1.msra.mxu0 0.0
    %329 = vmatprep.subr.mxu0 0.0
    %330 = vmatpush1.msra.mxu0 0.0
    %331 = vmatprep.subr.mxu0 0.0
    %332 = vmatpush1.msra.mxu0 0.0
    %333 = vmatprep.subr.mxu0 0.0
    %334 = vmatpush1.msra.mxu0 0.0
    %335 = vmatprep.subr.mxu0 0.0
    %336 = vmatpush1.msra.mxu0 0.0
    %337 = vmatprep.subr.mxu0 0.0
    %338 = vmatpush1.msra.mxu0 0.0
    %339 = vmatprep.subr.mxu0 0.0
    %340 = vmatpush1.msra.mxu0 0.0
    %341 = vmatprep.subr.mxu0 0.0
    %342 = vmatpush1.msra.mxu0 0.0
    %343 = vmatprep.mubr.f32.mxu0 0.0
    %v344 = vand.u32 %v41, 4294901760
    %v345 = vsub.f32 %v41, %v344
    %v346 = vand.u32 %v345, 4294901760
    %347 = vmatmul.mubr.f32.gmra.mrb[0].mxu0 %v346
    %v348 = vpop.f32.mrb[0].mxu0
    %v349 = vadd.f32 %v274, %v348
    %v350 = vpop.f32.mrb[0].mxu0
    %351 = vdwg.mxu0
    %352 = vmatprep.subr.mxu0 0.0
    %v353 = vand.u32 %v29, 4294901760
    %v354 = vsub.f32 %v29, %v353
    %v355 = vand.u32 %v354, 4294901760
    %356 = vmatpush1.msra.mxu0 %v355
    %357 = vmatprep.subr.mxu0 0.0
    %v358 = vand.u32 %v30, 4294901760
    %v359 = vsub.f32 %v30, %v358
    %v360 = vand.u32 %v359, 4294901760
    %361 = vmatpush1.msra.mxu0 %v360
    %362 = vmatprep.subr.mxu0 0.0
    %363 = vmatpush1.msra.mxu0 0.0
    %364 = vmatprep.subr.mxu0 0.0
    %365 = vmatpush1.msra.mxu0 0.0
    %366 = vmatprep.subr.mxu0 0.0
    %367 = vmatpush1.msra.mxu0 0.0
    %368 = vmatprep.subr.mxu0 0.0
    %369 = vmatpush1.msra.mxu0 0.0
    %370 = vmatprep.subr.mxu0 0.0
    %371 = vmatpush1.msra.mxu0 0.0
    %372 = vmatprep.subr.mxu0 0.0
    %373 = vmatpush1.msra.mxu0 0.0
    %374 = vmatprep.subr.mxu0 0.0
    %375 = vmatpush1.msra.mxu0 0.0
    %376 = vmatprep.subr.mxu0 0.0
    %377 = vmatpush1.msra.mxu0 0.0
    %378 = vmatprep.subr.mxu0 0.0
    %379 = vmatpush1.msra.mxu0 0.0
    %380 = vmatprep.subr.mxu0 0.0
    %381 = vmatpush1.msra.mxu0 0.0
    %382 = vmatprep.subr.mxu0 0.0
    %383 = vmatpush1.msra.mxu0 0.0
    %384 = vmatprep.subr.mxu0 0.0
    %385 = vmatpush1.msra.mxu0 0.0
    %386 = vmatprep.subr.mxu0 0.0
    %387 = vmatpush1.msra.mxu0 0.0
    %388 = vmatprep.subr.mxu0 0.0
    %389 = vmatpush1.msra.mxu0 0.0
    %390 = vmatprep.subr.mxu0 0.0
    %391 = vmatpush1.msra.mxu0 0.0
    %392 = vmatprep.subr.mxu0 0.0
    %393 = vmatpush1.msra.mxu0 0.0
    %394 = vmatprep.subr.mxu0 0.0
    %395 = vmatpush1.msra.mxu0 0.0
    %396 = vmatprep.subr.mxu0 0.0
    %397 = vmatpush1.msra.mxu0 0.0
    %398 = vmatprep.subr.mxu0 0.0
    %399 = vmatpush1.msra.mxu0 0.0
    %400 = vmatprep.subr.mxu0 0.0
    %401 = vmatpush1.msra.mxu0 0.0
    %402 = vmatprep.subr.mxu0 0.0
    %403 = vmatpush1.msra.mxu0 0.0
    %404 = vmatprep.subr.mxu0 0.0
    %405 = vmatpush1.msra.mxu0 0.0
    %406 = vmatprep.subr.mxu0 0.0
    %407 = vmatpush1.msra.mxu0 0.0
    %408 = vmatprep.subr.mxu0 0.0
    %409 = vmatpush1.msra.mxu0 0.0
    %410 = vmatprep.subr.mxu0 0.0
    %411 = vmatpush1.msra.mxu0 0.0
    %412 = vmatprep.subr.mxu0 0.0
    %413 = vmatpush1.msra.mxu0 0.0
    %414 = vmatprep.subr.mxu0 0.0
    %415 = vmatpush1.msra.mxu0 0.0
    %416 = vmatprep.subr.mxu0 0.0
    %417 = vmatpush1.msra.mxu0 0.0
    %418 = vmatprep.subr.mxu0 0.0
    %419 = vmatpush1.msra.mxu0 0.0
    %420 = vmatprep.subr.mxu0 0.0
    %421 = vmatpush1.msra.mxu0 0.0
    %422 = vmatprep.mubr.f32.mxu0 0.0
    %v423 = vand.u32 %v41, 4294901760
    %424 = vmatmul.mubr.f32.gmra.mrb[0].mxu0 %v423
    %v425 = vpop.f32.mrb[0].mxu0
    %v426 = vadd.f32 %v349, %v425
    %v427 = vpop.f32.mrb[0].mxu0
    %428 = vdwg.mxu0
    %429 = vmatprep.subr.mxu0 0.0
    %v430 = vand.u32 %v29, 4294901760
    %431 = vmatpush1.msra.mxu0 %v430
    %432 = vmatprep.subr.mxu0 0.0
    %v433 = vand.u32 %v30, 4294901760
    %434 = vmatpush1.msra.mxu0 %v433
    %435 = vmatprep.subr.mxu0 0.0
    %436 = vmatpush1.msra.mxu0 0.0
    %437 = vmatprep.subr.mxu0 0.0
    %438 = vmatpush1.msra.mxu0 0.0
    %439 = vmatprep.subr.mxu0 0.0
    %440 = vmatpush1.msra.mxu0 0.0
    %441 = vmatprep.subr.mxu0 0.0
    %442 = vmatpush1.msra.mxu0 0.0
    %443 = vmatprep.subr.mxu0 0.0
    %444 = vmatpush1.msra.mxu0 0.0
    %445 = vmatprep.subr.mxu0 0.0
    %446 = vmatpush1.msra.mxu0 0.0
    %447 = vmatprep.subr.mxu0 0.0
    %448 = vmatpush1.msra.mxu0 0.0
    %449 = vmatprep.subr.mxu0 0.0
    %450 = vmatpush1.msra.mxu0 0.0
    %451 = vmatprep.subr.mxu0 0.0
    %452 = vmatpush1.msra.mxu0 0.0
    %453 = vmatprep.subr.mxu0 0.0
    %454 = vmatpush1.msra.mxu0 0.0
    %455 = vmatprep.subr.mxu0 0.0
    %456 = vmatpush1.msra.mxu0 0.0
    %457 = vmatprep.subr.mxu0 0.0
    %458 = vmatpush1.msra.mxu0 0.0
    %459 = vmatprep.subr.mxu0 0.0
    %460 = vmatpush1.msra.mxu0 0.0
    %461 = vmatprep.subr.mxu0 0.0
    %462 = vmatpush1.msra.mxu0 0.0
    %463 = vmatprep.subr.mxu0 0.0
    %464 = vmatpush1.msra.mxu0 0.0
    %465 = vmatprep.subr.mxu0 0.0
    %466 = vmatpush1.msra.mxu0 0.0
    %467 = vmatprep.subr.mxu0 0.0
    %468 = vmatpush1.msra.mxu0 0.0
    %469 = vmatprep.subr.mxu0 0.0
    %470 = vmatpush1.msra.mxu0 0.0
    %471 = vmatprep.subr.mxu0 0.0
    %472 = vmatpush1.msra.mxu0 0.0
    %473 = vmatprep.subr.mxu0 0.0
    %474 = vmatpush1.msra.mxu0 0.0
    %475 = vmatprep.subr.mxu0 0.0
    %476 = vmatpush1.msra.mxu0 0.0
    %477 = vmatprep.subr.mxu0 0.0
    %478 = vmatpush1.msra.mxu0 0.0
    %479 = vmatprep.subr.mxu0 0.0
    %480 = vmatpush1.msra.mxu0 0.0
    %481 = vmatprep.subr.mxu0 0.0
    %482 = vmatpush1.msra.mxu0 0.0
    %483 = vmatprep.subr.mxu0 0.0
    %484 = vmatpush1.msra.mxu0 0.0
    %485 = vmatprep.subr.mxu0 0.0
    %486 = vmatpush1.msra.mxu0 0.0
    %487 = vmatprep.subr.mxu0 0.0
    %488 = vmatpush1.msra.mxu0 0.0
    %489 = vmatprep.subr.mxu0 0.0
    %490 = vmatpush1.msra.mxu0 0.0
    %491 = vmatprep.subr.mxu0 0.0
    %492 = vmatpush1.msra.mxu0 0.0
    %493 = vmatprep.subr.mxu0 0.0
    %494 = vmatpush1.msra.mxu0 0.0
    %495 = vmatprep.mubr.f32.mxu0 0.0
    %v496 = vand.u32 %v41, 4294901760
    %497 = vmatmul.mubr.f32.gmra.mrb[0].mxu0 %v496
    %v498 = vpop.f32.mrb[0].mxu0
    %v499 = vadd.f32 %v426, %v498
    %v500 = vpop.f32.mrb[0].mxu0
    %501 = vdwg.mxu0
    %v502 = vsub.f32 %v27, %v499
    %v503 = vmul.f32 %v502, %v502
    %vm504 = vcmask 261120
    %v505 = vsel %vm504, %v503, 0.0
    %506 = vadd.xlane.f32.xlu0 %v505
    %v507 = vpop.xlane.xlu0 %506
    %v508 = vmax.f32 %v507, 1e-12
    %v509 = vmin.f32 %v508, 1e+12
    %v510 = vlaneseq
    %v511 = vshrl.u32 %v510, 7
    %s512 = smul.u32 0, 8
    %v513 = vstv %s512
    %v514 = vadd.s32 %v511, %v513
    %vm515 = vcmp.lt.s32.totalorder %v514, 8
    %v516 = vsel %vm515, %v509, 0.0
    %v517 = vrot.slane %v516, 4
    %v518 = vadd.f32 %v516, %v517
    %v519 = vrot.slane %v518, 2
    %v520 = vadd.f32 %v518, %v519
    %v521 = vrot.slane %v520, 1
    %v522 = vadd.f32 %v520, %v521
    %vm523 = vcmask 0
    %524 = vst.msk [vmem:[#allocation5] sm:$0x1] %vm523, %v522
    // Predicated region
    $region18: #{tpu_custom_call.1} parent=1 // pred_check
      _
    $region19: #{tpu_custom_call.1} parent=1 // pred_check_branch
      %526 = sbr.rel (0) target = $region21
    $region20: #{tpu_custom_call.1} parent=1 // pred_region
      %s528 = ssub.s32 16, 16
      %529 = vsyncadd [#allocation4], %s528
      %s531 = sshll.u32 [#allocation5], 4
      %s532 = int_to_ptr.vmem [resolvable:$true] %s531
      %534 = dma.vmem_to_hbm [thread:$0]  %s532, 16, %s3, [#allocation4]
    $region21: #{tpu_custom_call.1} parent=1 // pred_fallthru
      _
    // Predicated region
    $region22: #{tpu_custom_call.1} parent=1 // pred_check
      _
    $region23: #{tpu_custom_call.1} parent=1 // pred_check_branch
      %536 = sbr.rel (0) target = $region25
    $region24: #{tpu_custom_call.1} parent=1 // pred_region
      %537 = dma.done [#allocation4], 16
    $region25: #{tpu_custom_call.1} parent=1 // pred_fallthru
      _
    %538 = vsyncpa [#allocation3], 1
    %539 = vsyncpa [#allocation4], 1

</llo_original>
